<compile_context>
chip_gen: v6e
topology: v6e:2x2x1
jax: 0.10.0
libtpu: 0.0.40
codegen_flags: <defaults>
</compile_context>

<pallas_src>
import functools

import jax
import jax.numpy as jnp
from jax import lax
from jax.experimental import pallas as pl
from jax.experimental.pallas import tpu as pltpu


_VMEM_BUDGET_BYTES = 40 << 20  # working-set target, safe on v5e/v6e/v7x


def _round_up(x, m):
    return ((x + m - 1) // m) * m


def _probe_buffered():
    """Narrow, construction-time probe for pipeline_mode=pl.Buffered support."""
    try:
        pl.BlockSpec((8, 128), lambda i: (0, 0), pipeline_mode=pl.Buffered(1))
        return True
    except (TypeError, AttributeError):
        return False


_HAS_BUFFERED = _probe_buffered()


def _proj_kernel(x_ref, w_ref, b_ref, o_ref, *, compute_dtype):
    # x_ref: (C, t_hw) f32   w_ref: (C, tE) bf16   b_ref: (1, tE) f32
    # o_ref: (t_hw, tE) out_dtype
    x = x_ref[...].astype(compute_dtype)  # in-kernel cast (VPU), no HBM convert
    acc = lax.dot_general(
        x,
        w_ref[...],
        dimension_numbers=(((0,), (0,)), ((), ())),  # contract C: trans-A matmul
        preferred_element_type=jnp.float32,
    )
    o_ref[...] = (acc + b_ref[...]).astype(o_ref.dtype)


def _select_tiles(B, C, HW, E, out_bytes, t_hw_pref):
    """Pick (t_hw, t_e) under the VMEM budget; keep >= 2 grid steps if possible."""

    def working_set(t, te, n_e):
        w_bufs = 1 if (n_e == 1 and _HAS_BUFFERED) else 2
        return (
            2 * C * t * 4            # x tile (f32), double-buffered
            + 2 * t * te * out_bytes  # out tile, double-buffered
            + w_bufs * C * te * 2     # weight tile (bf16)
            + w_bufs * te * 4         # bias tile (f32)
        )

    te = E
    t = _round_up(min(t_hw_pref, _round_up(HW, 128)), 128)

    # Shrink the HW tile first to fit the VMEM budget.
    while t > 128 and working_set(t, te, pl.cdiv(E, te)) > _VMEM_BUDGET_BYTES:
        t -= 128
    # If still over budget (huge C*E), split E along lane-dense multiples of 128.
    while (
        working_set(t, te, pl.cdiv(E, te)) > _VMEM_BUDGET_BYTES
        and te > 128
        and E % 128 == 0
    ):
        te = max(128, _round_up(te // 2, 128))
    # Guarantee >= 2 grid steps so both v7x TensorCores get work (v5e/v6e have
    # a single TC; this only triggers when the whole problem is one tile, where
    # the extra step overhead is negligible).
    while B * pl.cdiv(HW, t) * pl.cdiv(E, te) < 2 and t > 128:
        t = max(128, _round_up(t // 2, 128))
    return t, te


def _proj_call(x_bct, w, b2d, *, t_hw, t_e, out_dtype):
    """x_bct: (B, C, HW) f32; w: (C, E) bf16; b2d: (1, E) f32."""
    B, C, HW = x_bct.shape
    E = w.shape[1]
    n_hw = pl.cdiv(HW, t_hw)
    n_e = pl.cdiv(E, t_e)
    out_bytes = jnp.dtype(out_dtype).itemsize

    # Weight / bias are resident across the whole grid when E is not split;
    # single-buffer them to halve their VMEM footprint.
    resident = (
        dict(pipeline_mode=pl.Buffered(1)) if (_HAS_BUFFERED and n_e == 1) else {}
    )

    cost = pl.CostEstimate(
        flops=2 * B * HW * C * E,
        transcendentals=0,
        bytes_accessed=(
            B * C * HW * x_bct.dtype.itemsize  # activations in (f32)
            + C * E * w.dtype.itemsize         # weight in (bf16)
            + E * 4                            # bias in
            + B * HW * E * out_bytes           # output out
        ),
    )

    ws = (
        2 * C * t_hw * x_bct.dtype.itemsize
        + 2 * t_hw * t_e * out_bytes
        + 2 * C * t_e * w.dtype.itemsize
        + 2 * t_e * 4
    )
    vmem_limit = int(min(_VMEM_BUDGET_BYTES + (8 << 20), max(2 * ws, 16 << 20)))

    kernel = functools.partial(_proj_kernel, compute_dtype=w.dtype)

    return pl.pallas_call(
        kernel,
        out_shape=jax.ShapeDtypeStruct((B, HW, E), out_dtype),
        grid=(B, n_hw, n_e),
        in_specs=[
            # (C, t_hw) activation tile; batch dim squeezed out.  Index does not
            # depend on j, so it is NOT re-DMA'd across the (innermost) E axis.
            pl.BlockSpec((None, C, t_hw), lambda b, i, j: (b, 0, i)),
            pl.BlockSpec((C, t_e), lambda b, i, j: (0, j), **resident),
            pl.BlockSpec((1, t_e), lambda b, i, j: (0, j), **resident),
        ],
        out_specs=pl.BlockSpec((None, t_hw, t_e), lambda b, i, j: (b, i, j)),
        compiler_params=pltpu.CompilerParams(
            dimension_semantics=("parallel", "parallel", "parallel"),
            vmem_limit_bytes=vmem_limit,
        ),
        cost_estimate=cost,
    )(x_bct, w, b2d)


def mlp_forward(
    x_nchw,
    weight,
    bias,
    *,
    t_hw=1024,
    compute_dtype=jnp.bfloat16,
    out_dtype=jnp.float32,
):
    """Pallas equivalent of MLP.forward.

    x_nchw: (B, C, H, W); weight: (C, E) (= PyTorch proj.weight.T); bias: (E,).
    Returns (B, H*W, E) in `out_dtype` (float32 by default, matching PyTorch).
    """
    B, C, H, W = x_nchw.shape
    K, E = weight.shape
    assert K == C, (K, C)
    HW = H * W

    # Keep the (B, C, HW) layout -- the token "transpose" happens inside the
    # kernel via the C-axis contraction, not as an XLA op.  No padding: the
    # ragged last HW block is handled by Pallas output masking.
    x_bct = x_nchw.reshape(B, C, HW).astype(jnp.float32)
    w_in = weight.astype(compute_dtype)            # parameter-sized, one-time
    b_in = bias.reshape(1, E).astype(jnp.float32)

    t, te = _select_tiles(B, C, HW, E, jnp.dtype(out_dtype).itemsize, t_hw)
    return _proj_call(x_bct, w_in, b_in, t_hw=t, t_e=te, out_dtype=out_dtype)


if __name__ == "__main__":
    # Small shapes consistent with the module: input_dim = C, embed_dim = E.
    B, C, H, W = 2, 256, 16, 16
    EMBED = 128

    key = jax.random.PRNGKey(0)
    kx, kw, kb = jax.random.split(key, 3)

    x = jax.random.normal(kx, (B, C, H, W), dtype=jnp.float32)
    # nn.Linear(C, EMBED): PyTorch weight is (EMBED, C); we store weight.T.
    bound = 1.0 / jnp.sqrt(jnp.float32(C))
    weight = jax.random.uniform(kw, (C, EMBED), jnp.float32, -bound, bound)
    bias = jax.random.uniform(kb, (EMBED,), jnp.float32, -bound, bound)

    out = jax.block_until_ready(mlp_forward(x, weight, bias))
    assert out.shape == (B, H * W, EMBED), out.shape

    # Reference with the same bf16 input rounding as the kernel (f32 accumulate).
    tokens = jnp.transpose(x.reshape(B, C, H * W), (0, 2, 1))
    tok_bf = tokens.astype(jnp.bfloat16).astype(jnp.float32)
    w_bf = weight.astype(jnp.bfloat16).astype(jnp.float32)
    ref = jnp.einsum("btc,ce->bte", tok_bf, w_bf,
                     precision=lax.Precision.HIGHEST) + bias
    assert jnp.allclose(out, ref, atol=2e-3, rtol=2e-3), float(
        jnp.max(jnp.abs(out - ref))
    )

    # Sanity check vs a full-f32 reference (looser tolerance for bf16 compute).
    ref_f32 = jnp.einsum("btc,ce->bte", tokens, weight,
                         precision=lax.Precision.HIGHEST) + bias
    assert jnp.allclose(out, ref_f32, atol=5e-2, rtol=5e-2)

    # Ragged spatial size (7x7 -> 49 tokens) exercises the masked last block.
    x2 = jax.random.normal(jax.random.PRNGKey(1), (B, C, 7, 7), jnp.float32)
    out2 = jax.block_until_ready(mlp_forward(x2, weight, bias))
    tok2 = (
        jnp.transpose(x2.reshape(B, C, 49), (0, 2, 1))
        .astype(jnp.bfloat16)
        .astype(jnp.float32)
    )
    ref2 = jnp.einsum("btc,ce->bte", tok2, w_bf,
                      precision=lax.Precision.HIGHEST) + bias
    assert out2.shape == (B, 49, EMBED), out2.shape
    assert jnp.allclose(out2, ref2, atol=2e-3, rtol=2e-3)

    print("KERNEL_OK")
</pallas_src>

<mosaic_0001>
module attributes {stable_mosaic.version = 11 : i64} {
  func.func @_proj_kernel(%arg0: i32, %arg1: i32, %arg2: i32, %arg3: memref<1x256x256xf32, #tpu.memory_space<vmem>>, %arg4: memref<256x128xbf16, #tpu.memory_space<vmem>>, %arg5: memref<1x128xf32, #tpu.memory_space<vmem>>, %arg6: memref<1x256x128xf32, #tpu.memory_space<vmem>>) attributes {dimension_semantics = [#tpu.dimension_semantics<parallel>, #tpu.dimension_semantics<parallel>, #tpu.dimension_semantics<parallel>], iteration_bounds = array<i64: 2, 1, 1>, scalar_prefetch = 0 : i64, scratch_operands = 0 : i64, tpu.core_type = #tpu.core_type<tc>, window_params = [{transform_indices = @transform_0, window_bounds = array<i64: 1, 256, 256>}, {pipeline_mode = #tpu.pipeline_mode<synchronous>, transform_indices = @transform_1, window_bounds = array<i64: 256, 128>}, {pipeline_mode = #tpu.pipeline_mode<synchronous>, transform_indices = @transform_2, window_bounds = array<i64: 1, 128>}, {transform_indices = @transform_3, window_bounds = array<i64: 1, 256, 128>}]} {
    %c0 = arith.constant 0 : index
    %c0_0 = arith.constant 0 : index
    %c0_1 = arith.constant 0 : index
    %0 = vector.load %arg3[%c0, %c0_0, %c0_1] : memref<1x256x256xf32, #tpu.memory_space<vmem>>, vector<1x256x256xf32>
    %1 = vector.shape_cast %0 : vector<1x256x256xf32> to vector<256x256xf32>
    %2 = arith.truncf %1 : vector<256x256xf32> to vector<256x256xbf16>
    %c0_2 = arith.constant 0 : index
    %c0_3 = arith.constant 0 : index
    %3 = vector.load %arg4[%c0_2, %c0_3] : memref<256x128xbf16, #tpu.memory_space<vmem>>, vector<256x128xbf16>
    %cst = arith.constant dense<0.000000e+00> : vector<256x128xf32>
    %4 = tpu.matmul %2, %3, %cst {dimension_numbers = #tpu.dot_dimension_numbers<[0], [0], [1], [1], [0, 1, 1, 1], [], []>} : vector<256x256xbf16>, vector<256x128xbf16>, vector<256x128xf32> -> vector<256x128xf32>
    %c0_4 = arith.constant 0 : index
    %c0_5 = arith.constant 0 : index
    %5 = vector.load %arg5[%c0_4, %c0_5] : memref<1x128xf32, #tpu.memory_space<vmem>>, vector<1x128xf32>
    %6 = vector.broadcast %5 : vector<1x128xf32> to vector<256x128xf32>
    %7 = arith.addf %4, %6 : vector<256x128xf32>
    %c0_6 = arith.constant 0 : index
    %c0_7 = arith.constant 0 : index
    %c0_8 = arith.constant 0 : index
    %8 = vector.load %arg6[%c0_6, %c0_7, %c0_8] : memref<1x256x128xf32, #tpu.memory_space<vmem>>, vector<1x256x128xf32>
    %9 = vector.shape_cast %8 : vector<1x256x128xf32> to vector<256x128xf32>
    %10 = vector.shape_cast %7 : vector<256x128xf32> to vector<1x256x128xf32>
    tpu.vector_store %arg6[%c0_6, %c0_7, %c0_8], %10 {strides = array<i32>} : memref<1x256x128xf32, #tpu.memory_space<vmem>>, vector<1x256x128xf32>,
    return
  }
  func.func @transform_0(%arg0: i32, %arg1: i32, %arg2: i32) -> (i32, i32, i32) {
    %c0_i32 = arith.constant 0 : i32
    %c0_i32_0 = arith.constant 0 : i32
    return %arg0, %c0_i32, %arg1 : i32, i32, i32
  }
  func.func @transform_1(%arg0: i32, %arg1: i32, %arg2: i32) -> (i32, i32) {
    %c0_i32 = arith.constant 0 : i32
    %c0_i32_0 = arith.constant 0 : i32
    return %c0_i32, %arg2 : i32, i32
  }
  func.func @transform_2(%arg0: i32, %arg1: i32, %arg2: i32) -> (i32, i32) {
    %c0_i32 = arith.constant 0 : i32
    %c0_i32_0 = arith.constant 0 : i32
    return %c0_i32, %arg2 : i32, i32
  }
  func.func @transform_3(%arg0: i32, %arg1: i32, %arg2: i32) -> (i32, i32, i32) {
    %c0_i32 = arith.constant 0 : i32
    return %arg0, %arg1, %arg2 : i32, i32, i32
  }
}

</mosaic_0001>

<llo_original>
// kernel: tpu_custom_call.1
$region0: #{tpu_custom_call.1}
  #allocation0 [shape = 'u32[]', space=smem, size = 0x4, offset = 0x4, fixed_abs, tag = 'smem constant byte address 0x4 - core index']
  #allocation1 [shape = 'u32[144,128]{1,0:T(1,128)}', space=vmem, size = 0x12000, scoped, tag = 'internal scratch']
  %s0 = inlined_call_operand.hbm [shape: f32[2,256,256], index: 0, kind: input, shape index: {}]
  %s1 = inlined_call_operand.hbm [shape: bf16[256,128], index: 1, kind: input, shape index: {}]
  %s2 = inlined_call_operand.vmem [shape: f32[1,128], index: 2, kind: input, shape index: {}]
  %s3 = inlined_call_operand.hbm [shape: f32[2,256,128], index: 3, kind: output, shape index: {}]
  %s4 = sld [smem:[#allocation0]]
  $region53: #{tpu_custom_call.1} parent=0
    _
  %s6 = ssub.s32 1, %s4
  %s7 = scalar_select 0, %s6, %s4
  $region1: #{tpu_custom_call.1} parent=0
    #allocation2 [shape = 'u8[524288]{0}', space=vmem, size = 0x80000, scoped, tag = 'input window, operand 0']
    #allocation3 [shape = 's32[2]{0}', space=sflag, size = 0x8, scoped, tag = 'scoped memory for tpu_custom_call.1']
    #allocation4 [shape = 's32[2]{0}', space=sflag, size = 0x8, scoped, tag = 'scoped memory for tpu_custom_call.1']
    #allocation5 [shape = 'u8[65536]{0}', space=vmem, size = 0x10000, scoped, tag = 'input window, operand 1, single buffered']
    #allocation6 [shape = 's32[1]{0}', space=sflag, size = 0x4, scoped, tag = 'scoped memory for tpu_custom_call.1']
    #allocation7 [shape = 'u8[262144]{0}', space=vmem, size = 0x40000, scoped, tag = 'output window, operand 0']
    %8 = vsyncpa [#allocation3], 0
    %s9 = scalar_lea.sflag [#allocation3], 1
    %10 = vsyncpa %s9, 0
    %11 = vsyncpa [#allocation6], 0
    %12 = vsyncpa [#allocation4], 0
    %s13 = scalar_lea.sflag [#allocation4], 1
    %14 = vsyncpa %s13, 0
    loop: start=0, step=1, limit=4
    $region2: #{tpu_custom_call.1} parent=1 // loop_pre_header
      _
    $region3: #{tpu_custom_call.1} parent=1 // loop_header
      %s16 = sphi 0, %s20
      %p17 = scmp.ge.s32.totalorder %s16, 4
      %s23 = sphi 0, %s42
      %s24 = sphi 0, %s38
      %s25 = sphi 0, %s34
      %s26 = sphi 0, %s23
      %s27 = sphi 0, %s24
      %s28 = sphi 0, %s25
      %s29 = sphi 0, %s26
      %s30 = sphi 0, %s27
      %s31 = sphi 0, %s28
      %s47 = sphi 0, %s49
      %s50 = sphi 0, %s47
      %s51 = sphi 0, %s50
      %s67 = sphi 0, %s51
      %s73 = sphi 0, %s75
      %s76 = sphi 0, %s73
      %s77 = sphi 0, %s76
      %s93 = sphi 0, %s77
      %s99 = sphi 0, %s101
      %s102 = sphi 0, %s99
      %s103 = sphi 0, %s102
      %s119 = sphi 0, %s103
      %s129 = sphi 0, %s131
      %s132 = sphi 0, %s129
      %s133 = sphi 0, %s132
      %s149 = sphi 0, %s133
    $region4: #{tpu_custom_call.1} parent=1 // loop_header_branch
      %19 = sbr.rel (%p17) target = $region8
    $region5: #{tpu_custom_call.1} parent=1 // loop_body
      %s21 = ssub.s32 %s16, 1
      %s22 = ssub.s32 %s16, 2
      %s32 = sadd.s32 1, %s25
      %p33 = scmp.ge.s32.totalorder %s32, 1
      %s34 = scalar_select %p33, 0, %s32
      %s35 = sadd.s32 1, %s24
      %s36 = scalar_select %p33, %s35, %s24
      %p37 = scmp.ge.s32.totalorder %s36, 1
      %s38 = scalar_select %p37, 0, %s36
      %s39 = sadd.s32 1, %s23
      %s40 = scalar_select %p37, %s39, %s23
      %p41 = scmp.ge.s32.totalorder %s40, 2
      %s42 = scalar_select %p41, 0, %s40
      %s43 = ssub.s32 %s23, %s42
      %s44 = ssub.s32 %s24, %s38
      %s45 = sor.u32 %s43, %s44
      %p46 = scmp.eq.s32.totalorder %s45, 0
      %s48 = sadd.s32 %s47, 1
      %s49 = scalar_select %p46, %s47, %s48
      %p52 = pneg %p46
      %p53 = scmp.eq.s32.totalorder %s16, 1
      %p54 = por %p52, %p53
      %p55 = scmp.ne.s32.totalorder %s47, %s50
      %p56 = scmp.eq.s32.totalorder %s16, 0
      %p57 = por %p55, %p56
      %p58 = scmp.ne.s32.totalorder %s47, %s50
      %p59 = scmp.eq.s32.totalorder %s21, 1
      %p60 = por %p58, %p59
      %p61 = scmp.ne.s32.totalorder %s50, %s51
      %p62 = scmp.eq.s32.totalorder %s21, 0
      %p63 = por %p61, %p62
      %p64 = scmp.ne.s32.totalorder %s50, %s51
      %p65 = scmp.eq.s32.totalorder %s22, 1
      %p66 = por %p64, %p65
      %p68 = scmp.ne.s32.totalorder %s51, %s67
      %p69 = scmp.eq.s32.totalorder %s22, 0
      %p70 = por %p68, %p69
      %s71 = ssub.s32 %s25, %s34
      %p72 = scmp.eq.s32.totalorder %s71, 0
      %s74 = sadd.s32 %s73, 1
      %s75 = scalar_select %p72, %s73, %s74
      %p78 = pneg %p72
      %p79 = scmp.eq.s32.totalorder %s16, 1
      %p80 = por %p78, %p79
      %p81 = scmp.ne.s32.totalorder %s73, %s76
      %p82 = scmp.eq.s32.totalorder %s16, 0
      %p83 = por %p81, %p82
      %p84 = scmp.ne.s32.totalorder %s73, %s76
      %p85 = scmp.eq.s32.totalorder %s21, 1
      %p86 = por %p84, %p85
      %p87 = scmp.ne.s32.totalorder %s76, %s77
      %p88 = scmp.eq.s32.totalorder %s21, 0
      %p89 = por %p87, %p88
      %p90 = scmp.ne.s32.totalorder %s76, %s77
      %p91 = scmp.eq.s32.totalorder %s22, 1
      %p92 = por %p90, %p91
      %p94 = scmp.ne.s32.totalorder %s77, %s93
      %p95 = scmp.eq.s32.totalorder %s22, 0
      %p96 = por %p94, %p95
      %s97 = ssub.s32 %s25, %s34
      %p98 = scmp.eq.s32.totalorder %s97, 0
      %s100 = sadd.s32 %s99, 1
      %s101 = scalar_select %p98, %s99, %s100
      %p104 = pneg %p98
      %p105 = scmp.eq.s32.totalorder %s16, 1
      %p106 = por %p104, %p105
      %p107 = scmp.ne.s32.totalorder %s99, %s102
      %p108 = scmp.eq.s32.totalorder %s16, 0
      %p109 = por %p107, %p108
      %p110 = scmp.ne.s32.totalorder %s99, %s102
      %p111 = scmp.eq.s32.totalorder %s21, 1
      %p112 = por %p110, %p111
      %p113 = scmp.ne.s32.totalorder %s102, %s103
      %p114 = scmp.eq.s32.totalorder %s21, 0
      %p115 = por %p113, %p114
      %p116 = scmp.ne.s32.totalorder %s102, %s103
      %p117 = scmp.eq.s32.totalorder %s22, 1
      %p118 = por %p116, %p117
      %p120 = scmp.ne.s32.totalorder %s103, %s119
      %p121 = scmp.eq.s32.totalorder %s22, 0
      %p122 = por %p120, %p121
      %s123 = ssub.s32 %s23, %s42
      %s124 = ssub.s32 %s24, %s38
      %s125 = sor.u32 %s123, %s124
      %s126 = ssub.s32 %s25, %s34
      %s127 = sor.u32 %s125, %s126
      %p128 = scmp.eq.s32.totalorder %s127, 0
      %s130 = sadd.s32 %s129, 1
      %s131 = scalar_select %p128, %s129, %s130
      %p134 = pneg %p128
      %p135 = scmp.eq.s32.totalorder %s16, 1
      %p136 = por %p134, %p135
      %p137 = scmp.ne.s32.totalorder %s129, %s132
      %p138 = scmp.eq.s32.totalorder %s16, 0
      %p139 = por %p137, %p138
      %p140 = scmp.ne.s32.totalorder %s129, %s132
      %p141 = scmp.eq.s32.totalorder %s21, 1
      %p142 = por %p140, %p141
      %p143 = scmp.ne.s32.totalorder %s132, %s133
      %p144 = scmp.eq.s32.totalorder %s21, 0
      %p145 = por %p143, %p144
      %p146 = scmp.ne.s32.totalorder %s132, %s133
      %p147 = scmp.eq.s32.totalorder %s22, 1
      %p148 = por %p146, %p147
      %p150 = scmp.ne.s32.totalorder %s133, %s149
      %p151 = scmp.eq.s32.totalorder %s22, 0
      %p152 = por %p150, %p151
      %p153 = scmp.le.s32.totalorder 1, %s16
      %p154 = scmp.lt.s32.totalorder %s16, 3
      %p155 = pnand %p153, %p154
      %p156 = pneg %p155
      // Predicated region
      $region9: #{tpu_custom_call.1} parent=5 // pred_check
        _
      $region10: #{tpu_custom_call.1} parent=5 // pred_check_branch
        %158 = sbr.rel (%p155) target = $region12
      $region11: #{tpu_custom_call.1} parent=5 // pred_region
        %s159 = ssub.s32 %s16, 1
        // Predicated region
        $region13: #{tpu_custom_call.1} parent=11 // pred_check
          %p160 = pneg %p89
        $region14: #{tpu_custom_call.1} parent=11 // pred_check_branch
          %162 = sbr.rel (%p160) target = $region16
        $region15: #{tpu_custom_call.1} parent=11 // pred_region
          %s164 = ssub.s32 2048, 2048
          %165 = vsyncadd [#allocation6], %s164
          %s166 = smul.addr %s28, 64
          %s167 = scalar_lea.hbm %s1, %s166
          %s168 = sshll.u32 [#allocation5], 4
          %s169 = int_to_ptr.vmem [resolvable:$true] %s168
          %174 = dma.hbm_to_vmem [thread:$0]  %s167, 2048, %s169, [#allocation6], 64, 64, 4
        $region16: #{tpu_custom_call.1} parent=11 // pred_fallthru
          _
        // Predicated region
        $region17: #{tpu_custom_call.1} parent=11 // pred_check
          %p175 = pneg %p115
        $region18: #{tpu_custom_call.1} parent=11 // pred_check_branch
          %177 = sbr.rel (%p175) target = $region20
        $region19: #{tpu_custom_call.1} parent=11 // pred_region
          %p178 = scmp.lt.s32.totalorder %s28, 0
          %s179 = scalar_select %p178, %s28, 0
          %s180 = scalar_lea.vmem %s2, %s179
        $region20: #{tpu_custom_call.1} parent=11 // pred_fallthru
          _
      $region12: #{tpu_custom_call.1} parent=5 // pred_fallthru
        _
      %p181 = scmp.lt.s32.totalorder %s16, 2
      // Predicated region
      $region21: #{tpu_custom_call.1} parent=5 // pred_check
        %p182 = pneg %p181
      $region22: #{tpu_custom_call.1} parent=5 // pred_check_branch
        %184 = sbr.rel (%p182) target = $region24
      $region23: #{tpu_custom_call.1} parent=5 // pred_region
        // Predicated region
        $region25: #{tpu_custom_call.1} parent=23 // pred_check
          %p185 = pneg %p57
        $region26: #{tpu_custom_call.1} parent=23 // pred_check_branch
          %187 = sbr.rel (%p185) target = $region28
        $region27: #{tpu_custom_call.1} parent=23 // pred_region
          %s188 = sand.u32 %s47, 1
          %s189 = scalar_lea.sflag [#allocation3], %s188
          %s190 = sand.u32 %s47, 1
          %s191 = smul.addr %s190, 512
          %s192 = scalar_lea.vmem [#allocation2], %s191
          %s193 = smul.u32 2, %s24
          %s195 = ssub.s32 8192, 8192
          %196 = vsyncadd %s189, %s195
          %s197 = smul.addr %s23, 64
          %s198 = sadd.s32 %s193, %s197
          %s199 = smul.addr %s198, 128
          %s200 = scalar_lea.hbm %s0, %s199
          %s201 = sshll.u32 %s192, 4
          %s202 = int_to_ptr.vmem [resolvable:$true] %s201
          %207 = dma.hbm_to_vmem [thread:$0]  %s200, 8192, %s202, %s189, 256, 256, 16
        $region28: #{tpu_custom_call.1} parent=23 // pred_fallthru
          _
      $region24: #{tpu_custom_call.1} parent=5 // pred_fallthru
        _
      %p208 = scmp.le.s32.totalorder 1, %s16
      %p209 = scmp.lt.s32.totalorder %s16, 3
      %p210 = pnand %p208, %p209
      %p211 = pneg %p210
      // Predicated region
      $region29: #{tpu_custom_call.1} parent=5 // pred_check
        _
      $region30: #{tpu_custom_call.1} parent=5 // pred_check_branch
        %213 = sbr.rel (%p210) target = $region32
      $region31: #{tpu_custom_call.1} parent=5 // pred_region
        %s214 = ssub.s32 %s16, 1
        %s215 = sand.u32 %s50, 1
        %s216 = scalar_lea.sflag [#allocation3], %s215
        %s217 = sand.u32 %s50, 1
        %s218 = smul.addr %s217, 512
        %s219 = scalar_lea.vmem [#allocation2], %s218
        // Predicated region
        $region33: #{tpu_custom_call.1} parent=31 // pred_check
          %p220 = pneg %p63
        $region34: #{tpu_custom_call.1} parent=31 // pred_check_branch
          %222 = sbr.rel (%p220) target = $region36
        $region35: #{tpu_custom_call.1} parent=31 // pred_region
          %223 = dma.done %s216, 8192
        $region36: #{tpu_custom_call.1} parent=31 // pred_fallthru
          _
        // Predicated region
        $region37: #{tpu_custom_call.1} parent=31 // pred_check
          %p224 = pneg %p89
        $region38: #{tpu_custom_call.1} parent=31 // pred_check_branch
          %226 = sbr.rel (%p224) target = $region40
        $region39: #{tpu_custom_call.1} parent=31 // pred_region
          %227 = dma.done [#allocation6], 2048
        $region40: #{tpu_custom_call.1} parent=31 // pred_fallthru
          _
        %s228 = sand.u32 %s50, 1
        %s229 = scalar_lea.sflag [#allocation3], %s228
        %s230 = sand.u32 %s50, 1
        %s231 = smul.addr %s230, 512
        %s232 = scalar_lea.vmem [#allocation2], %s231
        %p233 = pneg %p63
        %p234 = pneg %p60
        %p235 = pneg %p89
        %p236 = pneg %p86
        %p237 = scmp.lt.s32.totalorder %s28, 0
        %s238 = scalar_select %p237, %s28, 0
        %s239 = scalar_lea.vmem %s2, %s238
        %p240 = pneg %p115
        %p241 = pneg %p112
        %p242 = pneg %p145
        %p243 = pneg %p142
        %s244 = sand.u32 %s132, 1
        %s245 = scalar_lea.sflag [#allocation4], %s244
        %s246 = sand.u32 %s132, 1
        %s247 = smul.addr %s246, 256
        %s248 = scalar_lea.vmem [#allocation7], %s247
        %s249 = smul.u32 2, %s27
        %p250 = scmp.lt.s32.totalorder %s28, 0
        %s251 = scalar_select %p250, %s28, 0
        %s252 = scalar_lea.vmem %s2, %s251
        %s253 = smul.u32 32, %s27
        %v255 = vld [vmem:[%s219] sm:$0xff]
        %v256 = vld [vmem:[%s219 + $0x8] sm:$0xff]
        %v257 = vld [vmem:[%s219 + $0x10] sm:$0xff]
        %v258 = vld [vmem:[%s219 + $0x18] sm:$0xff]
        %v259 = vld [vmem:[%s219 + $0x20] sm:$0xff]
        %v260 = vld [vmem:[%s219 + $0x28] sm:$0xff]
        %v261 = vld [vmem:[%s219 + $0x30] sm:$0xff]
        %v262 = vld [vmem:[%s219 + $0x38] sm:$0xff]
        %v263 = vld [vmem:[%s219 + $0x40] sm:$0xff]
        %v264 = vld [vmem:[%s219 + $0x48] sm:$0xff]
        %v265 = vld [vmem:[%s219 + $0x50] sm:$0xff]
        %v266 = vld [vmem:[%s219 + $0x58] sm:$0xff]
        %v267 = vld [vmem:[%s219 + $0x60] sm:$0xff]
        %v268 = vld [vmem:[%s219 + $0x68] sm:$0xff]
        %v269 = vld [vmem:[%s219 + $0x70] sm:$0xff]
        %v270 = vld [vmem:[%s219 + $0x78] sm:$0xff]
        %v271 = vld [vmem:[%s219 + $0x80] sm:$0xff]
        %v272 = vld [vmem:[%s219 + $0x88] sm:$0xff]
        %v273 = vld [vmem:[%s219 + $0x90] sm:$0xff]
        %v274 = vld [vmem:[%s219 + $0x98] sm:$0xff]
        %v275 = vld [vmem:[%s219 + $0xa0] sm:$0xff]
        %v276 = vld [vmem:[%s219 + $0xa8] sm:$0xff]
        %v277 = vld [vmem:[%s219 + $0xb0] sm:$0xff]
        %v278 = vld [vmem:[%s219 + $0xb8] sm:$0xff]
        %v279 = vld [vmem:[%s219 + $0xc0] sm:$0xff]
        %v280 = vld [vmem:[%s219 + $0xc8] sm:$0xff]
        %v281 = vld [vmem:[%s219 + $0xd0] sm:$0xff]
        %v282 = vld [vmem:[%s219 + $0xd8] sm:$0xff]
        %v283 = vld [vmem:[%s219 + $0xe0] sm:$0xff]
        %v284 = vld [vmem:[%s219 + $0xe8] sm:$0xff]
        %v285 = vld [vmem:[%s219 + $0xf0] sm:$0xff]
        %v286 = vld [vmem:[%s219 + $0xf8] sm:$0xff]
        %v287 = vld [vmem:[%s219 + $0x100] sm:$0xff]
        %v288 = vld [vmem:[%s219 + $0x108] sm:$0xff]
        %v289 = vld [vmem:[%s219 + $0x110] sm:$0xff]
        %v290 = vld [vmem:[%s219 + $0x118] sm:$0xff]
        %v291 = vld [vmem:[%s219 + $0x120] sm:$0xff]
        %v292 = vld [vmem:[%s219 + $0x128] sm:$0xff]
        %v293 = vld [vmem:[%s219 + $0x130] sm:$0xff]
        %v294 = vld [vmem:[%s219 + $0x138] sm:$0xff]
        %v295 = vld [vmem:[%s219 + $0x140] sm:$0xff]
        %v296 = vld [vmem:[%s219 + $0x148] sm:$0xff]
        %v297 = vld [vmem:[%s219 + $0x150] sm:$0xff]
        %v298 = vld [vmem:[%s219 + $0x158] sm:$0xff]
        %v299 = vld [vmem:[%s219 + $0x160] sm:$0xff]
        %v300 = vld [vmem:[%s219 + $0x168] sm:$0xff]
        %v301 = vld [vmem:[%s219 + $0x170] sm:$0xff]
        %v302 = vld [vmem:[%s219 + $0x178] sm:$0xff]
        %v303 = vld [vmem:[%s219 + $0x180] sm:$0xff]
        %v304 = vld [vmem:[%s219 + $0x188] sm:$0xff]
        %v305 = vld [vmem:[%s219 + $0x190] sm:$0xff]
        %v306 = vld [vmem:[%s219 + $0x198] sm:$0xff]
        %v307 = vld [vmem:[%s219 + $0x1a0] sm:$0xff]
        %v308 = vld [vmem:[%s219 + $0x1a8] sm:$0xff]
        %v309 = vld [vmem:[%s219 + $0x1b0] sm:$0xff]
        %v310 = vld [vmem:[%s219 + $0x1b8] sm:$0xff]
        %v311 = vld [vmem:[%s219 + $0x1c0] sm:$0xff]
        %v312 = vld [vmem:[%s219 + $0x1c8] sm:$0xff]
        %v313 = vld [vmem:[%s219 + $0x1d0] sm:$0xff]
        %v314 = vld [vmem:[%s219 + $0x1d8] sm:$0xff]
        %v315 = vld [vmem:[%s219 + $0x1e0] sm:$0xff]
        %v316 = vld [vmem:[%s219 + $0x1e8] sm:$0xff]
        %v317 = vld [vmem:[%s219 + $0x1f0] sm:$0xff]
        %v318 = vld [vmem:[%s219 + $0x1f8] sm:$0xff]
        %v319 = vpack.c.bf16 %v257, %v255
        %v320 = vpack.c.bf16 %v258, %v256
        %v321 = vpack.c.bf16 %v261, %v259
        %v322 = vpack.c.bf16 %v262, %v260
        %v323 = vpack.c.bf16 %v265, %v263
        %v324 = vpack.c.bf16 %v266, %v264
        %v325 = vpack.c.bf16 %v269, %v267
        %v326 = vpack.c.bf16 %v270, %v268
        %v327 = vpack.c.bf16 %v273, %v271
        %v328 = vpack.c.bf16 %v274, %v272
        %v329 = vpack.c.bf16 %v277, %v275
        %v330 = vpack.c.bf16 %v278, %v276
        %v331 = vpack.c.bf16 %v281, %v279
        %v332 = vpack.c.bf16 %v282, %v280
        %v333 = vpack.c.bf16 %v285, %v283
        %v334 = vpack.c.bf16 %v286, %v284
        %v335 = vpack.c.bf16 %v289, %v287
        %v336 = vpack.c.bf16 %v290, %v288
        %v337 = vpack.c.bf16 %v293, %v291
        %v338 = vpack.c.bf16 %v294, %v292
        %v339 = vpack.c.bf16 %v297, %v295
        %v340 = vpack.c.bf16 %v298, %v296
        %v341 = vpack.c.bf16 %v301, %v299
        %v342 = vpack.c.bf16 %v302, %v300
        %v343 = vpack.c.bf16 %v305, %v303
        %v344 = vpack.c.bf16 %v306, %v304
        %v345 = vpack.c.bf16 %v309, %v307
        %v346 = vpack.c.bf16 %v310, %v308
        %v347 = vpack.c.bf16 %v313, %v311
        %v348 = vpack.c.bf16 %v314, %v312
        %v349 = vpack.c.bf16 %v317, %v315
        %v350 = vpack.c.bf16 %v318, %v316
        %v351 = vld [vmem:[#allocation5] sm:$0xf]
        %v352 = vld [vmem:[#allocation5 + $0x4] sm:$0xf]
        %v353 = vld [vmem:[#allocation5 + $0x8] sm:$0xf]
        %v354 = vld [vmem:[#allocation5 + $0xc] sm:$0xf]
        %v355 = vld [vmem:[#allocation5 + $0x10] sm:$0xf]
        %v356 = vld [vmem:[#allocation5 + $0x14] sm:$0xf]
        %v357 = vld [vmem:[#allocation5 + $0x18] sm:$0xf]
        %v358 = vld [vmem:[#allocation5 + $0x1c] sm:$0xf]
        %v359 = vld [vmem:[#allocation5 + $0x20] sm:$0xf]
        %v360 = vld [vmem:[#allocation5 + $0x24] sm:$0xf]
        %v361 = vld [vmem:[#allocation5 + $0x28] sm:$0xf]
        %v362 = vld [vmem:[#allocation5 + $0x2c] sm:$0xf]
        %v363 = vld [vmem:[#allocation5 + $0x30] sm:$0xf]
        %v364 = vld [vmem:[#allocation5 + $0x34] sm:$0xf]
        %v365 = vld [vmem:[#allocation5 + $0x38] sm:$0xf]
        %v366 = vld [vmem:[#allocation5 + $0x3c] sm:$0xf]
        %v367 = vld [vmem:[#allocation5 + $0x40] sm:$0xf]
        %v368 = vld [vmem:[#allocation5 + $0x44] sm:$0xf]
        %v369 = vld [vmem:[#allocation5 + $0x48] sm:$0xf]
        %v370 = vld [vmem:[#allocation5 + $0x4c] sm:$0xf]
        %v371 = vld [vmem:[#allocation5 + $0x50] sm:$0xf]
        %v372 = vld [vmem:[#allocation5 + $0x54] sm:$0xf]
        %v373 = vld [vmem:[#allocation5 + $0x58] sm:$0xf]
        %v374 = vld [vmem:[#allocation5 + $0x5c] sm:$0xf]
        %v375 = vld [vmem:[#allocation5 + $0x60] sm:$0xf]
        %v376 = vld [vmem:[#allocation5 + $0x64] sm:$0xf]
        %v377 = vld [vmem:[#allocation5 + $0x68] sm:$0xf]
        %v378 = vld [vmem:[#allocation5 + $0x6c] sm:$0xf]
        %v379 = vld [vmem:[#allocation5 + $0x70] sm:$0xf]
        %v380 = vld [vmem:[#allocation5 + $0x74] sm:$0xf]
        %v381 = vld [vmem:[#allocation5 + $0x78] sm:$0xf]
        %v382 = vld [vmem:[#allocation5 + $0x7c] sm:$0xf]
        %v383 = vld [vmem:[%s252] sm:$0x1]
        %v385 = vlaneseq
        %v386 = vshrl.u32 %v385, 7
        %v387 = vsub.s32 0, %v386
        %v388 = vrot.slane %v383, %v387
        %390 = vxpose.xlu0.c.b16.start [1/8] %v319, 128
        %391 = vxpose.xlu0.c.b16.cont [2/8] %v321, 128
        %392 = vxpose.xlu0.c.b16.cont [3/8] %v323, 128
        %393 = vxpose.xlu0.c.b16.cont [4/8] %v325, 128
        %394 = vxpose.xlu0.c.b16.cont [5/8] %v327, 128
        %395 = vxpose.xlu0.c.b16.cont [6/8] %v329, 128
        %396 = vxpose.xlu0.c.b16.cont [7/8] %v331, 128
        %397 = vxpose.xlu0.c.b16.end [8/8] %v333, 128
        %v398 = vpop.trf.xlu0
        %v399 = vpop.trf.xlu0
        %v400 = vpop.trf.xlu0
        %v401 = vpop.trf.xlu0
        %v402 = vpop.trf.xlu0
        %v403 = vpop.trf.xlu0
        %v404 = vpop.trf.xlu0
        %v405 = vpop.trf.xlu0
        %406 = vxpose.xlu0.c.b16.start [1/8] %v320, 128
        %407 = vxpose.xlu0.c.b16.cont [2/8] %v322, 128
        %408 = vxpose.xlu0.c.b16.cont [3/8] %v324, 128
        %409 = vxpose.xlu0.c.b16.cont [4/8] %v326, 128
        %410 = vxpose.xlu0.c.b16.cont [5/8] %v328, 128
        %411 = vxpose.xlu0.c.b16.cont [6/8] %v330, 128
        %412 = vxpose.xlu0.c.b16.cont [7/8] %v332, 128
        %413 = vxpose.xlu0.c.b16.end [8/8] %v334, 128
        %v414 = vpop.trf.xlu0
        %v415 = vpop.trf.xlu0
        %v416 = vpop.trf.xlu0
        %v417 = vpop.trf.xlu0
        %v418 = vpop.trf.xlu0
        %v419 = vpop.trf.xlu0
        %v420 = vpop.trf.xlu0
        %v421 = vpop.trf.xlu0
        %422 = vxpose.xlu0.c.b16.start [1/8] %v335, 128
        %423 = vxpose.xlu0.c.b16.cont [2/8] %v337, 128
        %424 = vxpose.xlu0.c.b16.cont [3/8] %v339, 128
        %425 = vxpose.xlu0.c.b16.cont [4/8] %v341, 128
        %426 = vxpose.xlu0.c.b16.cont [5/8] %v343, 128
        %427 = vxpose.xlu0.c.b16.cont [6/8] %v345, 128
        %428 = vxpose.xlu0.c.b16.cont [7/8] %v347, 128
        %429 = vxpose.xlu0.c.b16.end [8/8] %v349, 128
        %v430 = vpop.trf.xlu0
        %v431 = vpop.trf.xlu0
        %v432 = vpop.trf.xlu0
        %v433 = vpop.trf.xlu0
        %v434 = vpop.trf.xlu0
        %v435 = vpop.trf.xlu0
        %v436 = vpop.trf.xlu0
        %v437 = vpop.trf.xlu0
        %438 = vxpose.xlu0.c.b16.start [1/8] %v336, 128
        %439 = vxpose.xlu0.c.b16.cont [2/8] %v338, 128
        %440 = vxpose.xlu0.c.b16.cont [3/8] %v340, 128
        %441 = vxpose.xlu0.c.b16.cont [4/8] %v342, 128
        %442 = vxpose.xlu0.c.b16.cont [5/8] %v344, 128
        %443 = vxpose.xlu0.c.b16.cont [6/8] %v346, 128
        %444 = vxpose.xlu0.c.b16.cont [7/8] %v348, 128
        %445 = vxpose.xlu0.c.b16.end [8/8] %v350, 128
        %v446 = vpop.trf.xlu0
        %v447 = vpop.trf.xlu0
        %v448 = vpop.trf.xlu0
        %v449 = vpop.trf.xlu0
        %v450 = vpop.trf.xlu0
        %v451 = vpop.trf.xlu0
        %v452 = vpop.trf.xlu0
        %v453 = vpop.trf.xlu0
        %v486 = vunpack.c.l.b16 %v351
        %v487 = vunpack.c.l.b16 %v352
        %v488 = vunpack.c.l.b16 %v353
        %v489 = vunpack.c.l.b16 %v354
        %v490 = vunpack.c.l.b16 %v355
        %v491 = vunpack.c.l.b16 %v356
        %v492 = vunpack.c.l.b16 %v357
        %v493 = vunpack.c.l.b16 %v358
        %v494 = vunpack.c.l.b16 %v359
        %v495 = vunpack.c.l.b16 %v360
        %v496 = vunpack.c.l.b16 %v361
        %v497 = vunpack.c.l.b16 %v362
        %v498 = vunpack.c.l.b16 %v363
        %v499 = vunpack.c.l.b16 %v364
        %v500 = vunpack.c.l.b16 %v365
        %v501 = vunpack.c.l.b16 %v366
        %v502 = vunpack.c.l.b16 %v367
        %v503 = vunpack.c.l.b16 %v368
        %v504 = vunpack.c.l.b16 %v369
        %v505 = vunpack.c.l.b16 %v370
        %v506 = vunpack.c.l.b16 %v371
        %v507 = vunpack.c.l.b16 %v372
        %v508 = vunpack.c.l.b16 %v373
        %v509 = vunpack.c.l.b16 %v374
        %v510 = vunpack.c.l.b16 %v375
        %v511 = vunpack.c.l.b16 %v376
        %v512 = vunpack.c.l.b16 %v377
        %v513 = vunpack.c.l.b16 %v378
        %v514 = vunpack.c.l.b16 %v379
        %v515 = vunpack.c.l.b16 %v380
        %v516 = vunpack.c.l.b16 %v381
        %v517 = vunpack.c.l.b16 %v382
        %v518 = vpack.c.b16 %v487, %v486
        %v519 = vpack.c.b16 %v489, %v488
        %v520 = vpack.c.b16 %v491, %v490
        %v521 = vpack.c.b16 %v493, %v492
        %v522 = vpack.c.b16 %v495, %v494
        %v523 = vpack.c.b16 %v497, %v496
        %v524 = vpack.c.b16 %v499, %v498
        %v525 = vpack.c.b16 %v501, %v500
        %v526 = vpack.c.b16 %v503, %v502
        %v527 = vpack.c.b16 %v505, %v504
        %v528 = vpack.c.b16 %v507, %v506
        %v529 = vpack.c.b16 %v509, %v508
        %v530 = vpack.c.b16 %v511, %v510
        %v531 = vpack.c.b16 %v513, %v512
        %v532 = vpack.c.b16 %v515, %v514
        %v533 = vpack.c.b16 %v517, %v516
        %550 = vmatprep.subr.bf16.mxu0 0
        %551 = vmatpush1.bf16.msra.mxu0 %v525
        %552 = vmatprep.subr.bf16.mxu0 0
        %553 = vmatpush1.bf16.msra.mxu0 %v524
        %554 = vmatprep.subr.bf16.mxu0 0
        %555 = vmatpush1.bf16.msra.mxu0 %v523
        %556 = vmatprep.subr.bf16.mxu0 0
        %557 = vmatpush1.bf16.msra.mxu0 %v522
        %558 = vmatprep.subr.bf16.mxu0 0
        %559 = vmatpush1.bf16.msra.mxu0 %v521
        %560 = vmatprep.subr.bf16.mxu0 0
        %561 = vmatpush1.bf16.msra.mxu0 %v520
        %562 = vmatprep.subr.bf16.mxu0 0
        %563 = vmatpush1.bf16.msra.mxu0 %v519
        %564 = vmatprep.subr.bf16.mxu0 0
        %565 = vmatpush1.bf16.msra.mxu0 %v518
        %566 = vmatprep.subr.bf16.mxu0 0
        %567 = vmatpush2.bf16.msra.mxu0 %v533
        %568 = vmatprep.subr.bf16.mxu0 0
        %569 = vmatpush2.bf16.msra.mxu0 %v532
        %570 = vmatprep.subr.bf16.mxu0 0
        %571 = vmatpush2.bf16.msra.mxu0 %v531
        %572 = vmatprep.subr.bf16.mxu0 0
        %573 = vmatpush2.bf16.msra.mxu0 %v530
        %574 = vmatprep.subr.bf16.mxu0 0
        %575 = vmatpush2.bf16.msra.mxu0 %v529
        %576 = vmatprep.subr.bf16.mxu0 0
        %577 = vmatpush2.bf16.msra.mxu0 %v528
        %578 = vmatprep.subr.bf16.mxu0 0
        %579 = vmatpush2.bf16.msra.mxu0 %v527
        %580 = vmatprep.subr.bf16.mxu0 0
        %581 = vmatpush2.bf16.msra.mxu0 %v526
        %582 = vmatprep.mubr.bf16.mxu0 %v430
        %583 = vmatmul.mubr.bf16.gmra.mxu0 %v398
        %v584 = vpop.f32.mrf.mxu0
        %v585 = vadd.f32 %v388, %v584
        %v586 = vpop.f32.mrf.mxu0
        %v587 = vpop.f32.mrf.mxu0
        %v588 = vadd.f32 %v388, %v587
        %v589 = vpop.f32.mrf.mxu0
        %590 = vmatprep.mubr.bf16.mxu0 %v431
        %591 = vmatmul.mubr.bf16.gmra.mxu0 %v399
        %v592 = vpop.f32.mrf.mxu0
        %v593 = vadd.f32 %v388, %v592
        %v594 = vpop.f32.mrf.mxu0
        %v595 = vpop.f32.mrf.mxu0
        %v596 = vadd.f32 %v388, %v595
        %v597 = vpop.f32.mrf.mxu0
        %598 = vmatprep.mubr.bf16.mxu0 %v432
        %599 = vmatmul.mubr.bf16.gmra.mxu0 %v400
        %v600 = vpop.f32.mrf.mxu0
        %v601 = vadd.f32 %v388, %v600
        %v602 = vpop.f32.mrf.mxu0
        %v603 = vpop.f32.mrf.mxu0
        %v604 = vadd.f32 %v388, %v603
        %v605 = vpop.f32.mrf.mxu0
        %606 = vmatprep.mubr.bf16.mxu0 %v433
        %607 = vmatmul.mubr.bf16.gmra.mxu0 %v401
        %v608 = vpop.f32.mrf.mxu0
        %v609 = vadd.f32 %v388, %v608
        %v610 = vpop.f32.mrf.mxu0
        %v611 = vpop.f32.mrf.mxu0
        %v612 = vadd.f32 %v388, %v611
        %v613 = vpop.f32.mrf.mxu0
        %614 = vmatprep.mubr.bf16.mxu0 %v434
        %615 = vmatmul.mubr.bf16.gmra.mxu0 %v402
        %v616 = vpop.f32.mrf.mxu0
        %v617 = vadd.f32 %v388, %v616
        %v618 = vpop.f32.mrf.mxu0
        %v619 = vpop.f32.mrf.mxu0
        %v620 = vadd.f32 %v388, %v619
        %v621 = vpop.f32.mrf.mxu0
        %622 = vmatprep.mubr.bf16.mxu0 %v435
        %623 = vmatmul.mubr.bf16.gmra.mxu0 %v403
        %v624 = vpop.f32.mrf.mxu0
        %v625 = vadd.f32 %v388, %v624
        %v626 = vpop.f32.mrf.mxu0
        %v627 = vpop.f32.mrf.mxu0
        %v628 = vadd.f32 %v388, %v627
        %v629 = vpop.f32.mrf.mxu0
        %630 = vmatprep.mubr.bf16.mxu0 %v436
        %631 = vmatmul.mubr.bf16.gmra.mxu0 %v404
        %v632 = vpop.f32.mrf.mxu0
        %v633 = vadd.f32 %v388, %v632
        %v634 = vpop.f32.mrf.mxu0
        %v635 = vpop.f32.mrf.mxu0
        %v636 = vadd.f32 %v388, %v635
        %v637 = vpop.f32.mrf.mxu0
        %638 = vmatprep.mubr.bf16.mxu0 %v437
        %639 = vmatmul.mubr.bf16.gmra.mxu0 %v405
        %v640 = vpop.f32.mrf.mxu0
        %v641 = vadd.f32 %v388, %v640
        %v642 = vpop.f32.mrf.mxu0
        %v643 = vpop.f32.mrf.mxu0
        %v644 = vadd.f32 %v388, %v643
        %v645 = vpop.f32.mrf.mxu0
        %646 = vmatprep.mubr.bf16.mxu0 %v446
        %647 = vmatmul.mubr.bf16.gmra.mxu0 %v414
        %v648 = vpop.f32.mrf.mxu0
        %v649 = vadd.f32 %v388, %v648
        %v650 = vpop.f32.mrf.mxu0
        %v651 = vpop.f32.mrf.mxu0
        %v652 = vadd.f32 %v388, %v651
        %v653 = vpop.f32.mrf.mxu0
        %654 = vmatprep.mubr.bf16.mxu0 %v447
        %655 = vmatmul.mubr.bf16.gmra.mxu0 %v415
        %v656 = vpop.f32.mrf.mxu0
        %v657 = vadd.f32 %v388, %v656
        %v658 = vpop.f32.mrf.mxu0
        %v659 = vpop.f32.mrf.mxu0
        %v660 = vadd.f32 %v388, %v659
        %v661 = vpop.f32.mrf.mxu0
        %662 = vmatprep.mubr.bf16.mxu0 %v448
        %663 = vmatmul.mubr.bf16.gmra.mxu0 %v416
        %v664 = vpop.f32.mrf.mxu0
        %v665 = vadd.f32 %v388, %v664
        %v666 = vpop.f32.mrf.mxu0
        %v667 = vpop.f32.mrf.mxu0
        %v668 = vadd.f32 %v388, %v667
        %v669 = vpop.f32.mrf.mxu0
        %670 = vmatprep.mubr.bf16.mxu0 %v449
        %671 = vmatmul.mubr.bf16.gmra.mxu0 %v417
        %v672 = vpop.f32.mrf.mxu0
        %v673 = vadd.f32 %v388, %v672
        %v674 = vpop.f32.mrf.mxu0
        %v675 = vpop.f32.mrf.mxu0
        %v676 = vadd.f32 %v388, %v675
        %v677 = vpop.f32.mrf.mxu0
        %678 = vmatprep.mubr.bf16.mxu0 %v450
        %679 = vmatmul.mubr.bf16.gmra.mxu0 %v418
        %v680 = vpop.f32.mrf.mxu0
        %v681 = vadd.f32 %v388, %v680
        %v682 = vpop.f32.mrf.mxu0
        %v683 = vpop.f32.mrf.mxu0
        %v684 = vadd.f32 %v388, %v683
        %v685 = vpop.f32.mrf.mxu0
        %686 = vmatprep.mubr.bf16.mxu0 %v451
        %687 = vmatmul.mubr.bf16.gmra.mxu0 %v419
        %v688 = vpop.f32.mrf.mxu0
        %v689 = vadd.f32 %v388, %v688
        %v690 = vpop.f32.mrf.mxu0
        %v691 = vpop.f32.mrf.mxu0
        %v692 = vadd.f32 %v388, %v691
        %v693 = vpop.f32.mrf.mxu0
        %694 = vmatprep.mubr.bf16.mxu0 %v452
        %695 = vmatmul.mubr.bf16.gmra.mxu0 %v420
        %v696 = vpop.f32.mrf.mxu0
        %v697 = vadd.f32 %v388, %v696
        %v698 = vpop.f32.mrf.mxu0
        %v699 = vpop.f32.mrf.mxu0
        %v700 = vadd.f32 %v388, %v699
        %v701 = vpop.f32.mrf.mxu0
        %702 = vmatprep.mubr.bf16.mxu0 %v453
        %703 = vmatmul.mubr.bf16.gmra.mxu0 %v421
        %v704 = vpop.f32.mrf.mxu0
        %v705 = vadd.f32 %v388, %v704
        %v706 = vpop.f32.mrf.mxu0
        %v707 = vpop.f32.mrf.mxu0
        %v708 = vadd.f32 %v388, %v707
        %v709 = vpop.f32.mrf.mxu0
        %710 = vdwg.mxu0
        %711 = vst [vmem:[%s248] sm:$0xff] %v585
        %712 = vst [vmem:[%s248 + $0x8] sm:$0xff] %v588
        %713 = vst [vmem:[%s248 + $0x10] sm:$0xff] %v593
        %714 = vst [vmem:[%s248 + $0x18] sm:$0xff] %v596
        %715 = vst [vmem:[%s248 + $0x20] sm:$0xff] %v601
        %716 = vst [vmem:[%s248 + $0x28] sm:$0xff] %v604
        %717 = vst [vmem:[%s248 + $0x30] sm:$0xff] %v609
        %718 = vst [vmem:[%s248 + $0x38] sm:$0xff] %v612
        %719 = vst [vmem:[%s248 + $0x40] sm:$0xff] %v617
        %720 = vst [vmem:[%s248 + $0x48] sm:$0xff] %v620
        %721 = vst [vmem:[%s248 + $0x50] sm:$0xff] %v625
        %722 = vst [vmem:[%s248 + $0x58] sm:$0xff] %v628
        %723 = vst [vmem:[%s248 + $0x60] sm:$0xff] %v633
        %724 = vst [vmem:[%s248 + $0x68] sm:$0xff] %v636
        %725 = vst [vmem:[%s248 + $0x70] sm:$0xff] %v641
        %726 = vst [vmem:[%s248 + $0x78] sm:$0xff] %v644
        %727 = vst [vmem:[%s248 + $0x80] sm:$0xff] %v649
        %728 = vst [vmem:[%s248 + $0x88] sm:$0xff] %v652
        %729 = vst [vmem:[%s248 + $0x90] sm:$0xff] %v657
        %730 = vst [vmem:[%s248 + $0x98] sm:$0xff] %v660
        %731 = vst [vmem:[%s248 + $0xa0] sm:$0xff] %v665
        %732 = vst [vmem:[%s248 + $0xa8] sm:$0xff] %v668
        %733 = vst [vmem:[%s248 + $0xb0] sm:$0xff] %v673
        %734 = vst [vmem:[%s248 + $0xb8] sm:$0xff] %v676
        %735 = vst [vmem:[%s248 + $0xc0] sm:$0xff] %v681
        %736 = vst [vmem:[%s248 + $0xc8] sm:$0xff] %v684
        %737 = vst [vmem:[%s248 + $0xd0] sm:$0xff] %v689
        %738 = vst [vmem:[%s248 + $0xd8] sm:$0xff] %v692
        %739 = vst [vmem:[%s248 + $0xe0] sm:$0xff] %v697
        %740 = vst [vmem:[%s248 + $0xe8] sm:$0xff] %v700
        %741 = vst [vmem:[%s248 + $0xf0] sm:$0xff] %v705
        %742 = vst [vmem:[%s248 + $0xf8] sm:$0xff] %v708
        %s743 = sand.u32 %s132, 1
        %s744 = scalar_lea.sflag [#allocation4], %s743
        %s745 = sand.u32 %s132, 1
        %s746 = smul.addr %s745, 256
        %s747 = scalar_lea.vmem [#allocation7], %s746
        // Predicated region
        $region41: #{tpu_custom_call.1} parent=31 // pred_check
          %p748 = pneg %p142
        $region42: #{tpu_custom_call.1} parent=31 // pred_check_branch
          %750 = sbr.rel (%p748) target = $region44
        $region43: #{tpu_custom_call.1} parent=31 // pred_region
          %s751 = smul.u32 32, %s27
          %s753 = ssub.s32 4096, 4096
          %754 = vsyncadd %s744, %s753
          %s755 = sadd.s32 %s28, %s751
          %s756 = smul.addr %s26, 32
          %s757 = sadd.s32 %s755, %s756
          %s758 = smul.addr %s757, 128
          %s759 = scalar_lea.hbm %s3, %s758
          %s760 = sshll.u32 %s747, 4
          %s761 = int_to_ptr.vmem [resolvable:$true] %s760
          %766 = dma.vmem_to_hbm [thread:$0]  %s761, 4096, %s759, %s744, 128, 128, 8
        $region44: #{tpu_custom_call.1} parent=31 // pred_fallthru
          _
      $region32: #{tpu_custom_call.1} parent=5 // pred_fallthru
        _
      %p767 = scmp.le.s32.totalorder 2, %s16
      // Predicated region
      $region45: #{tpu_custom_call.1} parent=5 // pred_check
        %p768 = pneg %p767
      $region46: #{tpu_custom_call.1} parent=5 // pred_check_branch
        %770 = sbr.rel (%p768) target = $region48
      $region47: #{tpu_custom_call.1} parent=5 // pred_region
        %s771 = ssub.s32 %s16, 2
        // Predicated region
        $region49: #{tpu_custom_call.1} parent=47 // pred_check
          %p772 = pneg %p148
        $region50: #{tpu_custom_call.1} parent=47 // pred_check_branch
          %774 = sbr.rel (%p772) target = $region52
        $region51: #{tpu_custom_call.1} parent=47 // pred_region
          %s775 = sand.u32 %s133, 1
          %s776 = scalar_lea.sflag [#allocation4], %s775
          %s777 = sand.u32 %s133, 1
          %s778 = smul.addr %s777, 256
          %s779 = scalar_lea.vmem [#allocation7], %s778
          %780 = dma.done %s776, 4096
        $region52: #{tpu_custom_call.1} parent=47 // pred_fallthru
          _
      $region48: #{tpu_custom_call.1} parent=5 // pred_fallthru
        _
    $region6: #{tpu_custom_call.1} parent=1 // loop_footer
      %s20 = sadd.s32 1, %s16
    $region7: #{tpu_custom_call.1} parent=1 // loop_footer_branch
      %15 = sbr.rel target = $region3
    $region8: #{tpu_custom_call.1} parent=1 // loop_exit
      _
    %781 = vsyncpa [#allocation3], 1
    %s782 = scalar_lea.sflag [#allocation3], 1
    %783 = vsyncpa %s782, 1
    %784 = vsyncpa [#allocation6], 1
    %785 = vsyncpa [#allocation4], 1
    %s786 = scalar_lea.sflag [#allocation4], 1
    %787 = vsyncpa %s786, 1

</llo_original>
